<compile_context>
chip_gen: v5e
topology: v5e:2x2
jax: 0.10.0
libtpu: 0.0.40
codegen_flags: <defaults>
</compile_context>

<pallas_src>
import jax
import jax.numpy as jnp
from jax.experimental import pallas as pl
from jax.experimental.pallas import tpu as pltpu

# ---------------- problem sizes (small, consistent with the module) ----------------
B = 2             # batch of query images
C, HH, WW = 4, 16, 16
D = C * HH * WW   # 1024 flattened features
N_OVERLAY = 8     # "n" in STRIP (module default 100; kept small here)
ROWS = B * N_OVERLAY
K = 16            # real number of classes of the synthetic classifier
K_PAD = 128       # lane-dense padded class dim
OUT_PAD = 128     # lane-dense output width (lanes [0, B) hold the results)
N_DATA = 32       # size of the clean "data" pool overlays are drawn from

ALPHA = 1.0
BETA = 1.0
NEG_BIG = -1e9    # bias for padded classes -> exp() underflows to exactly 0


def _elementwise_dtype():
    """bf16 superimpose on bf16-native VPUs (v6e/v7x); f32 on v5e and older."""
    try:
        kind = jax.devices()[0].device_kind.lower()
    except Exception:
        return jnp.float32
    if any(old in kind for old in ("v2", "v3", "v4", "v5")):
        return jnp.float32
    return jnp.bfloat16


EW_DTYPE = _elementwise_dtype()


def strip_kernel(img_ref, ov_ref, w_ref, b_ref, pool_ref, out_ref):
    # img_ref : (B, D)            EW_DTYPE backgrounds
    # ov_ref  : (N_OVERLAY, D)    EW_DTYPE overlays
    # w_ref   : (D, K_PAD)        bf16 classifier weights (cols >= K are zero)
    # b_ref   : (1, K_PAD)        f32 bias (entries >= K are NEG_BIG)
    # pool_ref: (ROWS, OUT_PAD)   f32, pool[r, b] = 1/N_OVERLAY iff r // N_OVERLAY == b
    # out_ref : (1, OUT_PAD)      f32; lanes [0, B) hold per-image mean entropies
    img = img_ref[...]
    ov = ov_ref[...]

    # Superimpose all B*N rows in one broadcasted VPU pass; rows
    # [b*N_OVERLAY, (b+1)*N_OVERLAY) belong to image b. alpha/beta muls elided at 1.0.
    a = img if ALPHA == 1.0 else ALPHA * img
    o = ov if BETA == 1.0 else BETA * ov
    x = jnp.clip(a[:, None, :] + o[None, :, :], 0.0, 1.0).reshape(ROWS, D)

    # model(x): linear classifier on the MXU, bf16 operands, f32 accumulation.
    logits = jnp.dot(x.astype(jnp.bfloat16), w_ref[...],
                     preferred_element_type=jnp.float32) + b_ref[...]   # (ROWS, K_PAD)

    # softmax entropy H = -sum_k p*log p = log(s) - sum(e*z)/s, z = logits - max.
    # Padded lanes: z ~ -1e9 -> e = 0 -> contribute nothing to s or e*z.
    m = jnp.max(logits, axis=-1, keepdims=True)
    z = logits - m
    e = jnp.exp(z)
    s = jnp.sum(e, axis=-1, keepdims=True)
    ez = jnp.sum(e * z, axis=-1, keepdims=True)
    ent = jnp.log(s) - ez / s            # exact divide: s is only (ROWS, 1), keeps H in [0, log K]

    # Per-image mean via the precomputed pooling matrix (1/N folded in); one
    # lane-dense (1, 128) store (lanes >= B stay 0).
    out_ref[...] = jnp.sum(ent * pool_ref[...], axis=0, keepdims=True)


# ---------------- one-time prep (model-load time; NOT in the per-call path) ----------------
def prepare_classifier(w, b):
    """Pad K -> 128 lanes: zero weight columns, very negative bias for padded classes."""
    w_pad = jnp.zeros((D, K_PAD), jnp.bfloat16).at[:, :K].set(w.astype(jnp.bfloat16))
    b_pad = jnp.full((1, K_PAD), NEG_BIG, jnp.float32).at[0, :K].set(b.astype(jnp.float32))
    return w_pad, b_pad


def make_pool():
    """Constant (ROWS, OUT_PAD) pooling matrix: per-image mean over its overlays."""
    rows = jnp.arange(ROWS)[:, None]
    cols = jnp.arange(OUT_PAD)[None, :]
    return jnp.where(rows // N_OVERLAY == cols, 1.0 / N_OVERLAY, 0.0).astype(jnp.float32)


# ---------------- per-call wrapper ----------------
@jax.jit
def strip_detection(imgs_nchw, overlays_nchw, w_pad, b_pad, pool):
    """imgs_nchw: (B,C,H,W); overlays_nchw: (n,C,H,W); w_pad/b_pad/pool: prepared constants."""
    imgs_flat = imgs_nchw.reshape(B, D).astype(EW_DTYPE)
    ov_flat = overlays_nchw.reshape(N_OVERLAY, D).astype(EW_DTYPE)

    out = pl.pallas_call(
        strip_kernel,
        out_shape=jax.ShapeDtypeStruct((1, OUT_PAD), jnp.float32),
        grid_spec=pltpu.PrefetchScalarGridSpec(
            num_scalar_prefetch=0,
            grid=(1,),  # collapsed: all B*n rows processed in a single step / one MXU LHS
            in_specs=[
                pl.BlockSpec((B, D), lambda i: (0, 0)),               # backgrounds
                pl.BlockSpec((N_OVERLAY, D), lambda i: (0, 0)),       # overlays
                pl.BlockSpec((D, K_PAD), lambda i: (0, 0)),           # classifier W (bf16)
                pl.BlockSpec((1, K_PAD), lambda i: (0, 0)),           # classifier bias
                pl.BlockSpec((ROWS, OUT_PAD), lambda i: (0, 0)),      # pooling matrix
            ],
            out_specs=pl.BlockSpec((1, OUT_PAD), lambda i: (0, 0)),
        ),
        compiler_params=pltpu.CompilerParams(
            dimension_semantics=("arbitrary",),
            # TODO(synk): at real-model sizes add pipeline_mode=pl.Buffered(1) on the W/bias
            # specs (no pipelining at grid=(1,)), tile D with a VMEM accumulator for v7x's
            # 64 MiB VMEM, add a "parallel" row-block axis for its 2 TCs, and raise
            # vmem_limit_bytes on v5e/v6e for larger resident tiles.
        ),
    )(imgs_flat, ov_flat, w_pad, b_pad, pool)
    return out[0, :B]  # one entropy score per input image (like torch.tensor(H))


# ---------------- pure-JAX f32 reference (mirrors the PyTorch forward) ----------------
def strip_reference(imgs_nchw, overlays_nchw, w, b):
    imgs = imgs_nchw.reshape(B, 1, D).astype(jnp.float32)
    ovs = overlays_nchw.reshape(1, N_OVERLAY, D).astype(jnp.float32)
    x = jnp.clip(ALPHA * imgs + BETA * ovs, 0.0, 1.0)
    logits = jnp.einsum("bnd,dk->bnk", x, w,
                        precision=jax.lax.Precision.HIGHEST) + b
    p = jax.nn.softmax(logits, axis=-1)
    ent = -jnp.sum(p * jnp.log(p), axis=-1)     # (B, N_OVERLAY)
    return ent.mean(axis=-1)                    # (B,)


if __name__ == "__main__":
    key = jax.random.PRNGKey(0)
    k_imgs, k_data, k_idx, k_w, k_b = jax.random.split(key, 5)

    # query images and the clean data pool, both in [0, 1] like image tensors
    imgs = jax.random.uniform(k_imgs, (B, C, HH, WW), dtype=jnp.float32)
    data_pool = jax.random.uniform(k_data, (N_DATA, C, HH, WW), dtype=jnp.float32)

    # np.random.randint(0, len(data), size=n) -> deterministic JAX equivalent
    idx = jax.random.randint(k_idx, (N_OVERLAY,), 0, N_DATA)
    overlays = data_pool[idx]                                 # (n, C, H, W)

    # synthetic deterministic "model": a linear classifier over flattened pixels
    w = jax.random.normal(k_w, (D, K), dtype=jnp.float32) * 0.05
    b = jax.random.normal(k_b, (K,), dtype=jnp.float32) * 0.01

    # one-time prep (hoisted out of the per-call path)
    w_pad, b_pad = prepare_classifier(w, b)
    pool = make_pool()

    H = strip_detection(imgs, overlays, w_pad, b_pad, pool)
    jax.block_until_ready(H)

    H_ref = strip_reference(imgs, overlays, w, b)

    # sanity: finite, bounded by [0, log K] (with slack), and close to the f32 reference
    # (bf16 MXU operands + bf16 superimpose on v6e/v7x shift logits by O(1e-2)).
    assert H.shape == (B,)
    assert bool(jnp.all(jnp.isfinite(H)))
    assert bool(jnp.all(H >= -1e-4)) and bool(jnp.all(H <= jnp.log(K) + 1e-3))
    assert bool(jnp.allclose(H, H_ref, atol=3e-2, rtol=3e-2))

    print("KERNEL_OK")
</pallas_src>

<mosaic_0001>
module attributes {stable_mosaic.version = 11 : i64} {
  func.func @strip_kernel(%arg0: i32, %arg1: memref<2x1024xbf16, #tpu.memory_space<vmem>>, %arg2: memref<8x1024xbf16, #tpu.memory_space<vmem>>, %arg3: memref<1024x128xbf16, #tpu.memory_space<vmem>>, %arg4: memref<1x128xf32, #tpu.memory_space<vmem>>, %arg5: memref<16x128xf32, #tpu.memory_space<vmem>>, %arg6: memref<1x128xf32, #tpu.memory_space<vmem>>) attributes {dimension_semantics = [#tpu.dimension_semantics<arbitrary>], iteration_bounds = array<i64: 1>, scalar_prefetch = 0 : i64, scratch_operands = 0 : i64, tpu.core_type = #tpu.core_type<tc>, window_params = [{pipeline_mode = #tpu.pipeline_mode<synchronous>, transform_indices = @transform_0, window_bounds = array<i64: 2, 1024>}, {pipeline_mode = #tpu.pipeline_mode<synchronous>, transform_indices = @transform_1, window_bounds = array<i64: 8, 1024>}, {pipeline_mode = #tpu.pipeline_mode<synchronous>, transform_indices = @transform_2, window_bounds = array<i64: 1024, 128>}, {pipeline_mode = #tpu.pipeline_mode<synchronous>, transform_indices = @transform_3, window_bounds = array<i64: 1, 128>}, {pipeline_mode = #tpu.pipeline_mode<synchronous>, transform_indices = @transform_4, window_bounds = array<i64: 16, 128>}, {pipeline_mode = #tpu.pipeline_mode<synchronous>, transform_indices = @transform_5, window_bounds = array<i64: 1, 128>}]} {
    %c0 = arith.constant 0 : index
    %c0_0 = arith.constant 0 : index
    %0 = vector.load %arg1[%c0, %c0_0] : memref<2x1024xbf16, #tpu.memory_space<vmem>>, vector<2x1024xbf16>
    %c0_1 = arith.constant 0 : index
    %c0_2 = arith.constant 0 : index
    %1 = vector.load %arg2[%c0_1, %c0_2] : memref<8x1024xbf16, #tpu.memory_space<vmem>>, vector<8x1024xbf16>
    %2 = vector.shape_cast %0 : vector<2x1024xbf16> to vector<2x1x1024xbf16>
    %3 = vector.shape_cast %1 : vector<8x1024xbf16> to vector<1x8x1024xbf16>
    %4 = vector.broadcast %2 : vector<2x1x1024xbf16> to vector<2x8x1024xbf16>
    %5 = vector.broadcast %3 : vector<1x8x1024xbf16> to vector<2x8x1024xbf16>
    %6 = arith.addf %4, %5 : vector<2x8x1024xbf16>
    %cst = arith.constant 0.000000e+00 : f32
    %cst_3 = arith.constant 1.000000e+00 : f32
    %7 = arith.truncf %cst : f32 to bf16
    %8 = vector.broadcast %7 : bf16 to vector<2x8x1024xbf16>
    %9 = arith.maximumf %8, %6 : vector<2x8x1024xbf16>
    %10 = arith.truncf %cst_3 : f32 to bf16
    %11 = vector.broadcast %10 : bf16 to vector<2x8x1024xbf16>
    %12 = arith.minimumf %11, %9 : vector<2x8x1024xbf16>
    %13 = vector.shape_cast %12 : vector<2x8x1024xbf16> to vector<16x1024xbf16>
    %c0_4 = arith.constant 0 : index
    %c0_5 = arith.constant 0 : index
    %14 = vector.load %arg3[%c0_4, %c0_5] : memref<1024x128xbf16, #tpu.memory_space<vmem>>, vector<1024x128xbf16>
    %cst_6 = arith.constant dense<0.000000e+00> : vector<16x128xf32>
    %15 = tpu.matmul %13, %14, %cst_6 {dimension_numbers = #tpu.dot_dimension_numbers<[1], [0], [0], [1], [0, 0, 1, 1], [], []>} : vector<16x1024xbf16>, vector<1024x128xbf16>, vector<16x128xf32> -> vector<16x128xf32>
    %c0_7 = arith.constant 0 : index
    %c0_8 = arith.constant 0 : index
    %16 = vector.load %arg4[%c0_7, %c0_8] : memref<1x128xf32, #tpu.memory_space<vmem>>, vector<1x128xf32>
    %17 = vector.broadcast %16 : vector<1x128xf32> to vector<16x128xf32>
    %18 = arith.addf %15, %17 : vector<16x128xf32>
    %cst_9 = arith.constant dense<0xFF800000> : vector<16xf32>
    %19 = vector.multi_reduction <maximumf>, %18, %cst_9 [1] : vector<16x128xf32> to vector<16xf32>
    %20 = vector.shape_cast %19 : vector<16xf32> to vector<16x1xf32>
    %21 = vector.broadcast %20 : vector<16x1xf32> to vector<16x128xf32>
    %22 = arith.subf %18, %21 : vector<16x128xf32>
    %23 = math.exp %22 : vector<16x128xf32>
    %cst_10 = arith.constant dense<0.000000e+00> : vector<16xf32>
    %24 = vector.multi_reduction <add>, %23, %cst_10 [1] : vector<16x128xf32> to vector<16xf32>
    %25 = vector.shape_cast %24 : vector<16xf32> to vector<16x1xf32>
    %26 = arith.mulf %23, %22 : vector<16x128xf32>
    %cst_11 = arith.constant dense<0.000000e+00> : vector<16xf32>
    %27 = vector.multi_reduction <add>, %26, %cst_11 [1] : vector<16x128xf32> to vector<16xf32>
    %28 = vector.shape_cast %27 : vector<16xf32> to vector<16x1xf32>
    %29 = math.log %25 : vector<16x1xf32>
    %30 = arith.divf %28, %25 : vector<16x1xf32>
    %31 = arith.subf %29, %30 : vector<16x1xf32>
    %c0_12 = arith.constant 0 : index
    %c0_13 = arith.constant 0 : index
    %32 = vector.load %arg5[%c0_12, %c0_13] : memref<16x128xf32, #tpu.memory_space<vmem>>, vector<16x128xf32>
    %33 = vector.broadcast %31 : vector<16x1xf32> to vector<16x128xf32>
    %34 = arith.mulf %33, %32 : vector<16x128xf32>
    %cst_14 = arith.constant dense<0.000000e+00> : vector<128xf32>
    %35 = vector.multi_reduction <add>, %34, %cst_14 [0] : vector<16x128xf32> to vector<128xf32>
    %36 = vector.shape_cast %35 : vector<128xf32> to vector<1x128xf32>
    %c0_15 = arith.constant 0 : index
    %c0_16 = arith.constant 0 : index
    %37 = vector.load %arg6[%c0_15, %c0_16] : memref<1x128xf32, #tpu.memory_space<vmem>>, vector<1x128xf32>
    tpu.vector_store %arg6[%c0_15, %c0_16], %36 {strides = array<i32>} : memref<1x128xf32, #tpu.memory_space<vmem>>, vector<1x128xf32>,
    return
  }
  func.func @transform_0(%arg0: i32) -> (i32, i32) {
    %c0_i32 = arith.constant 0 : i32
    %c0_i32_0 = arith.constant 0 : i32
    %c0_i32_1 = arith.constant 0 : i32
    return %c0_i32, %c0_i32_0 : i32, i32
  }
  func.func @transform_1(%arg0: i32) -> (i32, i32) {
    %c0_i32 = arith.constant 0 : i32
    %c0_i32_0 = arith.constant 0 : i32
    %c0_i32_1 = arith.constant 0 : i32
    return %c0_i32, %c0_i32_0 : i32, i32
  }
  func.func @transform_2(%arg0: i32) -> (i32, i32) {
    %c0_i32 = arith.constant 0 : i32
    %c0_i32_0 = arith.constant 0 : i32
    %c0_i32_1 = arith.constant 0 : i32
    return %c0_i32, %c0_i32_0 : i32, i32
  }
  func.func @transform_3(%arg0: i32) -> (i32, i32) {
    %c0_i32 = arith.constant 0 : i32
    %c0_i32_0 = arith.constant 0 : i32
    %c0_i32_1 = arith.constant 0 : i32
    return %c0_i32, %c0_i32_0 : i32, i32
  }
  func.func @transform_4(%arg0: i32) -> (i32, i32) {
    %c0_i32 = arith.constant 0 : i32
    %c0_i32_0 = arith.constant 0 : i32
    %c0_i32_1 = arith.constant 0 : i32
    return %c0_i32, %c0_i32_0 : i32, i32
  }
  func.func @transform_5(%arg0: i32) -> (i32, i32) {
    %c0_i32 = arith.constant 0 : i32
    %c0_i32_0 = arith.constant 0 : i32
    %c0_i32_1 = arith.constant 0 : i32
    return %c0_i32, %c0_i32_0 : i32, i32
  }
}

</mosaic_0001>

<llo_original>
// kernel: strip_detection.1
$region0: #{strip_detection.1}
  #allocation0 [shape = 'u32[]', space=smem, size = 0x4, offset = 0x4, fixed_abs, tag = 'smem constant byte address 0x4 - core index']
  #allocation1 [shape = 'u32[72,128]{1,0:T(1,128)}', space=vmem, size = 0x9000, scoped, tag = 'internal scratch']
  %s0 = inlined_call_operand.vmem [shape: bf16[2,1024], index: 0, kind: input, shape index: {}]
  %s1 = inlined_call_operand.vmem [shape: bf16[8,1024], index: 1, kind: input, shape index: {}]
  %s2 = inlined_call_operand.vmem [shape: bf16[1024,128], index: 2, kind: input, shape index: {}]
  %s3 = inlined_call_operand.vmem [shape: f32[1,128], index: 3, kind: input, shape index: {}]
  %s4 = inlined_call_operand.vmem [shape: f32[16,128], index: 4, kind: input, shape index: {}]
  %s5 = inlined_call_operand.vmem [shape: f32[1,128], index: 5, kind: output, shape index: {}]
  %s6 = sld [smem:[#allocation0]]
  $region30: #{strip_detection.1} parent=0
    _
  %s8 = ssub.s32 1, %s6
  %s9 = scalar_select 0, %s8, %s6
  // Predicated region
  $region2: #{strip_detection.1} parent=0 // pred_check
    _
  $region3: #{strip_detection.1} parent=0 // pred_check_branch
    %11 = sbr.rel (0) target = $region5
  $region4: #{strip_detection.1} parent=0 // pred_region
    _
  $region5: #{strip_detection.1} parent=0 // pred_fallthru
    _
  // Predicated region
  $region6: #{strip_detection.1} parent=0 // pred_check
    _
  $region7: #{strip_detection.1} parent=0 // pred_check_branch
    %13 = sbr.rel (0) target = $region9
  $region8: #{strip_detection.1} parent=0 // pred_region
    _
  $region9: #{strip_detection.1} parent=0 // pred_fallthru
    _
  // Predicated region
  $region10: #{strip_detection.1} parent=0 // pred_check
    _
  $region11: #{strip_detection.1} parent=0 // pred_check_branch
    %15 = sbr.rel (0) target = $region13
  $region12: #{strip_detection.1} parent=0 // pred_region
    _
  $region13: #{strip_detection.1} parent=0 // pred_fallthru
    _
  // Predicated region
  $region14: #{strip_detection.1} parent=0 // pred_check
    _
  $region15: #{strip_detection.1} parent=0 // pred_check_branch
    %17 = sbr.rel (0) target = $region17
  $region16: #{strip_detection.1} parent=0 // pred_region
    _
  $region17: #{strip_detection.1} parent=0 // pred_fallthru
    _
  // Predicated region
  $region18: #{strip_detection.1} parent=0 // pred_check
    _
  $region19: #{strip_detection.1} parent=0 // pred_check_branch
    %19 = sbr.rel (0) target = $region21
  $region20: #{strip_detection.1} parent=0 // pred_region
    _
  $region21: #{strip_detection.1} parent=0 // pred_fallthru
    _
  %v20 = vld [vmem:[%s0] sm:$0xff]
  %v21 = vld [vmem:[%s1] sm:$0xff]
  %v22 = vld [vmem:[%s1 + $0x8] sm:$0xff]
  %v23 = vld [vmem:[%s1 + $0x10] sm:$0xff]
  %v24 = vld [vmem:[%s1 + $0x18] sm:$0xff]
  %v26 = vunpack.i.l.s16 %v20
  %v27 = vunpack.i.h.s16 %v20
  %v28 = vpack.i.b16 %v26, %v26
  %v29 = vpack.i.b16 %v27, %v27
  %v30 = vperm.slane %v28, 0
  %v31 = vperm.slane %v28, 1
  %v32 = vperm.slane %v28, 2
  %v33 = vperm.slane %v28, 3
  %v34 = vperm.slane %v28, 4
  %v35 = vperm.slane %v28, 5
  %v36 = vperm.slane %v28, 6
  %v37 = vperm.slane %v28, 7
  %v38 = vperm.slane %v29, 0
  %v39 = vperm.slane %v29, 1
  %v40 = vperm.slane %v29, 2
  %v41 = vperm.slane %v29, 3
  %v42 = vperm.slane %v29, 4
  %v43 = vperm.slane %v29, 5
  %v44 = vperm.slane %v29, 6
  %v45 = vperm.slane %v29, 7
  %v47 = vpack.i.b16 %v30, %v30
  %v49 = vperm.slane %v47, 0
  %v51 = vpack.i.b16 %v31, %v31
  %v53 = vperm.slane %v51, 0
  %v55 = vpack.i.b16 %v32, %v32
  %v57 = vperm.slane %v55, 0
  %v59 = vpack.i.b16 %v33, %v33
  %v61 = vperm.slane %v59, 0
  %v63 = vpack.i.b16 %v34, %v34
  %v65 = vperm.slane %v63, 0
  %v67 = vpack.i.b16 %v35, %v35
  %v69 = vperm.slane %v67, 0
  %v71 = vpack.i.b16 %v36, %v36
  %v73 = vperm.slane %v71, 0
  %v75 = vpack.i.b16 %v37, %v37
  %v77 = vperm.slane %v75, 0
  %v79 = vpack.i.b16 %v38, %v38
  %v81 = vperm.slane %v79, 0
  %v83 = vpack.i.b16 %v39, %v39
  %v85 = vperm.slane %v83, 0
  %v87 = vpack.i.b16 %v40, %v40
  %v89 = vperm.slane %v87, 0
  %v91 = vpack.i.b16 %v41, %v41
  %v93 = vperm.slane %v91, 0
  %v95 = vpack.i.b16 %v42, %v42
  %v97 = vperm.slane %v95, 0
  %v99 = vpack.i.b16 %v43, %v43
  %v101 = vperm.slane %v99, 0
  %v103 = vpack.i.b16 %v44, %v44
  %v105 = vperm.slane %v103, 0
  %v107 = vpack.i.b16 %v45, %v45
  %v109 = vperm.slane %v107, 0
  %v110 = vunpack.c.l.bf16 %v49
  %v111 = vunpack.c.l.bf16 %v53
  %v112 = vunpack.c.l.bf16 %v57
  %v113 = vunpack.c.l.bf16 %v61
  %v114 = vunpack.c.l.bf16 %v65
  %v115 = vunpack.c.l.bf16 %v69
  %v116 = vunpack.c.l.bf16 %v73
  %v117 = vunpack.c.l.bf16 %v77
  %v118 = vunpack.c.l.bf16 %v81
  %v119 = vunpack.c.l.bf16 %v85
  %v120 = vunpack.c.l.bf16 %v89
  %v121 = vunpack.c.l.bf16 %v93
  %v122 = vunpack.c.l.bf16 %v97
  %v123 = vunpack.c.l.bf16 %v101
  %v124 = vunpack.c.l.bf16 %v105
  %v125 = vunpack.c.l.bf16 %v109
  %v126 = vunpack.c.l.bf16 %v21
  %v127 = vunpack.c.h.bf16 %v21
  %v128 = vunpack.c.l.bf16 %v22
  %v129 = vunpack.c.h.bf16 %v22
  %v130 = vunpack.c.l.bf16 %v23
  %v131 = vunpack.c.h.bf16 %v23
  %v132 = vunpack.c.l.bf16 %v24
  %v133 = vunpack.c.h.bf16 %v24
  %v134 = vadd.f32 %v110, %v126
  %v135 = vadd.f32 %v111, %v127
  %v136 = vadd.f32 %v112, %v128
  %v137 = vadd.f32 %v113, %v129
  %v138 = vadd.f32 %v114, %v130
  %v139 = vadd.f32 %v115, %v131
  %v140 = vadd.f32 %v116, %v132
  %v141 = vadd.f32 %v117, %v133
  %v142 = vadd.f32 %v118, %v126
  %v143 = vadd.f32 %v119, %v127
  %v144 = vadd.f32 %v120, %v128
  %v145 = vadd.f32 %v121, %v129
  %v146 = vadd.f32 %v122, %v130
  %v147 = vadd.f32 %v123, %v131
  %v148 = vadd.f32 %v124, %v132
  %v149 = vadd.f32 %v125, %v133
  %v150 = vpack.c.bf16 %v135, %v134
  %v151 = vpack.c.bf16 %v137, %v136
  %v152 = vpack.c.bf16 %v139, %v138
  %v153 = vpack.c.bf16 %v141, %v140
  %v154 = vpack.c.bf16 %v143, %v142
  %v155 = vpack.c.bf16 %v145, %v144
  %v156 = vpack.c.bf16 %v147, %v146
  %v157 = vpack.c.bf16 %v149, %v148
  %v158 = vunpack.c.l.bf16 %v150
  %v159 = vunpack.c.h.bf16 %v150
  %v160 = vunpack.c.l.bf16 %v151
  %v161 = vunpack.c.h.bf16 %v151
  %v162 = vunpack.c.l.bf16 %v152
  %v163 = vunpack.c.h.bf16 %v152
  %v164 = vunpack.c.l.bf16 %v153
  %v165 = vunpack.c.h.bf16 %v153
  %v166 = vunpack.c.l.bf16 %v154
  %v167 = vunpack.c.h.bf16 %v154
  %v168 = vunpack.c.l.bf16 %v155
  %v169 = vunpack.c.h.bf16 %v155
  %v170 = vunpack.c.l.bf16 %v156
  %v171 = vunpack.c.h.bf16 %v156
  %v172 = vunpack.c.l.bf16 %v157
  %v173 = vunpack.c.h.bf16 %v157
  %v174 = vmax.f32 %v158, 0.0
  %v175 = vmax.f32 %v159, 0.0
  %v176 = vmax.f32 %v160, 0.0
  %v177 = vmax.f32 %v161, 0.0
  %v178 = vmax.f32 %v162, 0.0
  %v179 = vmax.f32 %v163, 0.0
  %v180 = vmax.f32 %v164, 0.0
  %v181 = vmax.f32 %v165, 0.0
  %v182 = vmax.f32 %v166, 0.0
  %v183 = vmax.f32 %v167, 0.0
  %v184 = vmax.f32 %v168, 0.0
  %v185 = vmax.f32 %v169, 0.0
  %v186 = vmax.f32 %v170, 0.0
  %v187 = vmax.f32 %v171, 0.0
  %v188 = vmax.f32 %v172, 0.0
  %v189 = vmax.f32 %v173, 0.0
  %v190 = vpack.c.bf16 %v175, %v174
  %v191 = vpack.c.bf16 %v177, %v176
  %v192 = vpack.c.bf16 %v179, %v178
  %v193 = vpack.c.bf16 %v181, %v180
  %v194 = vpack.c.bf16 %v183, %v182
  %v195 = vpack.c.bf16 %v185, %v184
  %v196 = vpack.c.bf16 %v187, %v186
  %v197 = vpack.c.bf16 %v189, %v188
  %v198 = vunpack.c.l.bf16 %v190
  %v199 = vunpack.c.h.bf16 %v190
  %v200 = vunpack.c.l.bf16 %v191
  %v201 = vunpack.c.h.bf16 %v191
  %v202 = vunpack.c.l.bf16 %v192
  %v203 = vunpack.c.h.bf16 %v192
  %v204 = vunpack.c.l.bf16 %v193
  %v205 = vunpack.c.h.bf16 %v193
  %v206 = vunpack.c.l.bf16 %v194
  %v207 = vunpack.c.h.bf16 %v194
  %v208 = vunpack.c.l.bf16 %v195
  %v209 = vunpack.c.h.bf16 %v195
  %v210 = vunpack.c.l.bf16 %v196
  %v211 = vunpack.c.h.bf16 %v196
  %v212 = vunpack.c.l.bf16 %v197
  %v213 = vunpack.c.h.bf16 %v197
  %v214 = vmin.f32 %v198, 1.0
  %v215 = vmin.f32 %v199, 1.0
  %v216 = vmin.f32 %v200, 1.0
  %v217 = vmin.f32 %v201, 1.0
  %v218 = vmin.f32 %v202, 1.0
  %v219 = vmin.f32 %v203, 1.0
  %v220 = vmin.f32 %v204, 1.0
  %v221 = vmin.f32 %v205, 1.0
  %v222 = vmin.f32 %v206, 1.0
  %v223 = vmin.f32 %v207, 1.0
  %v224 = vmin.f32 %v208, 1.0
  %v225 = vmin.f32 %v209, 1.0
  %v226 = vmin.f32 %v210, 1.0
  %v227 = vmin.f32 %v211, 1.0
  %v228 = vmin.f32 %v212, 1.0
  %v229 = vmin.f32 %v213, 1.0
  %v230 = vpack.c.bf16 %v215, %v214
  %v231 = vpack.c.bf16 %v217, %v216
  %v232 = vpack.c.bf16 %v219, %v218
  %v233 = vpack.c.bf16 %v221, %v220
  %v234 = vpack.c.bf16 %v223, %v222
  %v235 = vpack.c.bf16 %v225, %v224
  %v236 = vpack.c.bf16 %v227, %v226
  %v237 = vpack.c.bf16 %v229, %v228
  %v238 = vld [vmem:[%s2] sm:$0xf]
  %v239 = vld [vmem:[%s2 + $0x4] sm:$0xf]
  %v240 = vld [vmem:[%s2 + $0x8] sm:$0xf]
  %v241 = vld [vmem:[%s2 + $0xc] sm:$0xf]
  %v242 = vld [vmem:[%s2 + $0x10] sm:$0xf]
  %v243 = vld [vmem:[%s2 + $0x14] sm:$0xf]
  %v244 = vld [vmem:[%s2 + $0x18] sm:$0xf]
  %v245 = vld [vmem:[%s2 + $0x1c] sm:$0xf]
  %v246 = vld [vmem:[%s2 + $0x20] sm:$0xf]
  %v247 = vld [vmem:[%s2 + $0x24] sm:$0xf]
  %v248 = vld [vmem:[%s2 + $0x28] sm:$0xf]
  %v249 = vld [vmem:[%s2 + $0x2c] sm:$0xf]
  %v250 = vld [vmem:[%s2 + $0x30] sm:$0xf]
  %v251 = vld [vmem:[%s2 + $0x34] sm:$0xf]
  %v252 = vld [vmem:[%s2 + $0x38] sm:$0xf]
  %v253 = vld [vmem:[%s2 + $0x3c] sm:$0xf]
  %v254 = vld [vmem:[%s2 + $0x40] sm:$0xf]
  %v255 = vld [vmem:[%s2 + $0x44] sm:$0xf]
  %v256 = vld [vmem:[%s2 + $0x48] sm:$0xf]
  %v257 = vld [vmem:[%s2 + $0x4c] sm:$0xf]
  %v258 = vld [vmem:[%s2 + $0x50] sm:$0xf]
  %v259 = vld [vmem:[%s2 + $0x54] sm:$0xf]
  %v260 = vld [vmem:[%s2 + $0x58] sm:$0xf]
  %v261 = vld [vmem:[%s2 + $0x5c] sm:$0xf]
  %v262 = vld [vmem:[%s2 + $0x60] sm:$0xf]
  %v263 = vld [vmem:[%s2 + $0x64] sm:$0xf]
  %v264 = vld [vmem:[%s2 + $0x68] sm:$0xf]
  %v265 = vld [vmem:[%s2 + $0x6c] sm:$0xf]
  %v266 = vld [vmem:[%s2 + $0x70] sm:$0xf]
  %v267 = vld [vmem:[%s2 + $0x74] sm:$0xf]
  %v268 = vld [vmem:[%s2 + $0x78] sm:$0xf]
  %v269 = vld [vmem:[%s2 + $0x7c] sm:$0xf]
  %v270 = vld [vmem:[%s2 + $0x80] sm:$0xf]
  %v271 = vld [vmem:[%s2 + $0x84] sm:$0xf]
  %v272 = vld [vmem:[%s2 + $0x88] sm:$0xf]
  %v273 = vld [vmem:[%s2 + $0x8c] sm:$0xf]
  %v274 = vld [vmem:[%s2 + $0x90] sm:$0xf]
  %v275 = vld [vmem:[%s2 + $0x94] sm:$0xf]
  %v276 = vld [vmem:[%s2 + $0x98] sm:$0xf]
  %v277 = vld [vmem:[%s2 + $0x9c] sm:$0xf]
  %v278 = vld [vmem:[%s2 + $0xa0] sm:$0xf]
  %v279 = vld [vmem:[%s2 + $0xa4] sm:$0xf]
  %v280 = vld [vmem:[%s2 + $0xa8] sm:$0xf]
  %v281 = vld [vmem:[%s2 + $0xac] sm:$0xf]
  %v282 = vld [vmem:[%s2 + $0xb0] sm:$0xf]
  %v283 = vld [vmem:[%s2 + $0xb4] sm:$0xf]
  %v284 = vld [vmem:[%s2 + $0xb8] sm:$0xf]
  %v285 = vld [vmem:[%s2 + $0xbc] sm:$0xf]
  %v286 = vld [vmem:[%s2 + $0xc0] sm:$0xf]
  %v287 = vld [vmem:[%s2 + $0xc4] sm:$0xf]
  %v288 = vld [vmem:[%s2 + $0xc8] sm:$0xf]
  %v289 = vld [vmem:[%s2 + $0xcc] sm:$0xf]
  %v290 = vld [vmem:[%s2 + $0xd0] sm:$0xf]
  %v291 = vld [vmem:[%s2 + $0xd4] sm:$0xf]
  %v292 = vld [vmem:[%s2 + $0xd8] sm:$0xf]
  %v293 = vld [vmem:[%s2 + $0xdc] sm:$0xf]
  %v294 = vld [vmem:[%s2 + $0xe0] sm:$0xf]
  %v295 = vld [vmem:[%s2 + $0xe4] sm:$0xf]
  %v296 = vld [vmem:[%s2 + $0xe8] sm:$0xf]
  %v297 = vld [vmem:[%s2 + $0xec] sm:$0xf]
  %v298 = vld [vmem:[%s2 + $0xf0] sm:$0xf]
  %v299 = vld [vmem:[%s2 + $0xf4] sm:$0xf]
  %v300 = vld [vmem:[%s2 + $0xf8] sm:$0xf]
  %v301 = vld [vmem:[%s2 + $0xfc] sm:$0xf]
  %v302 = vld [vmem:[%s2 + $0x100] sm:$0xf]
  %v303 = vld [vmem:[%s2 + $0x104] sm:$0xf]
  %v304 = vld [vmem:[%s2 + $0x108] sm:$0xf]
  %v305 = vld [vmem:[%s2 + $0x10c] sm:$0xf]
  %v306 = vld [vmem:[%s2 + $0x110] sm:$0xf]
  %v307 = vld [vmem:[%s2 + $0x114] sm:$0xf]
  %v308 = vld [vmem:[%s2 + $0x118] sm:$0xf]
  %v309 = vld [vmem:[%s2 + $0x11c] sm:$0xf]
  %v310 = vld [vmem:[%s2 + $0x120] sm:$0xf]
  %v311 = vld [vmem:[%s2 + $0x124] sm:$0xf]
  %v312 = vld [vmem:[%s2 + $0x128] sm:$0xf]
  %v313 = vld [vmem:[%s2 + $0x12c] sm:$0xf]
  %v314 = vld [vmem:[%s2 + $0x130] sm:$0xf]
  %v315 = vld [vmem:[%s2 + $0x134] sm:$0xf]
  %v316 = vld [vmem:[%s2 + $0x138] sm:$0xf]
  %v317 = vld [vmem:[%s2 + $0x13c] sm:$0xf]
  %v318 = vld [vmem:[%s2 + $0x140] sm:$0xf]
  %v319 = vld [vmem:[%s2 + $0x144] sm:$0xf]
  %v320 = vld [vmem:[%s2 + $0x148] sm:$0xf]
  %v321 = vld [vmem:[%s2 + $0x14c] sm:$0xf]
  %v322 = vld [vmem:[%s2 + $0x150] sm:$0xf]
  %v323 = vld [vmem:[%s2 + $0x154] sm:$0xf]
  %v324 = vld [vmem:[%s2 + $0x158] sm:$0xf]
  %v325 = vld [vmem:[%s2 + $0x15c] sm:$0xf]
  %v326 = vld [vmem:[%s2 + $0x160] sm:$0xf]
  %v327 = vld [vmem:[%s2 + $0x164] sm:$0xf]
  %v328 = vld [vmem:[%s2 + $0x168] sm:$0xf]
  %v329 = vld [vmem:[%s2 + $0x16c] sm:$0xf]
  %v330 = vld [vmem:[%s2 + $0x170] sm:$0xf]
  %v331 = vld [vmem:[%s2 + $0x174] sm:$0xf]
  %v332 = vld [vmem:[%s2 + $0x178] sm:$0xf]
  %v333 = vld [vmem:[%s2 + $0x17c] sm:$0xf]
  %v334 = vld [vmem:[%s2 + $0x180] sm:$0xf]
  %v335 = vld [vmem:[%s2 + $0x184] sm:$0xf]
  %v336 = vld [vmem:[%s2 + $0x188] sm:$0xf]
  %v337 = vld [vmem:[%s2 + $0x18c] sm:$0xf]
  %v338 = vld [vmem:[%s2 + $0x190] sm:$0xf]
  %v339 = vld [vmem:[%s2 + $0x194] sm:$0xf]
  %v340 = vld [vmem:[%s2 + $0x198] sm:$0xf]
  %v341 = vld [vmem:[%s2 + $0x19c] sm:$0xf]
  %v342 = vld [vmem:[%s2 + $0x1a0] sm:$0xf]
  %v343 = vld [vmem:[%s2 + $0x1a4] sm:$0xf]
  %v344 = vld [vmem:[%s2 + $0x1a8] sm:$0xf]
  %v345 = vld [vmem:[%s2 + $0x1ac] sm:$0xf]
  %v346 = vld [vmem:[%s2 + $0x1b0] sm:$0xf]
  %v347 = vld [vmem:[%s2 + $0x1b4] sm:$0xf]
  %v348 = vld [vmem:[%s2 + $0x1b8] sm:$0xf]
  %v349 = vld [vmem:[%s2 + $0x1bc] sm:$0xf]
  %v350 = vld [vmem:[%s2 + $0x1c0] sm:$0xf]
  %v351 = vld [vmem:[%s2 + $0x1c4] sm:$0xf]
  %v352 = vld [vmem:[%s2 + $0x1c8] sm:$0xf]
  %v353 = vld [vmem:[%s2 + $0x1cc] sm:$0xf]
  %v354 = vld [vmem:[%s2 + $0x1d0] sm:$0xf]
  %v355 = vld [vmem:[%s2 + $0x1d4] sm:$0xf]
  %v356 = vld [vmem:[%s2 + $0x1d8] sm:$0xf]
  %v357 = vld [vmem:[%s2 + $0x1dc] sm:$0xf]
  %v358 = vld [vmem:[%s2 + $0x1e0] sm:$0xf]
  %v359 = vld [vmem:[%s2 + $0x1e4] sm:$0xf]
  %v360 = vld [vmem:[%s2 + $0x1e8] sm:$0xf]
  %v361 = vld [vmem:[%s2 + $0x1ec] sm:$0xf]
  %v362 = vld [vmem:[%s2 + $0x1f0] sm:$0xf]
  %v363 = vld [vmem:[%s2 + $0x1f4] sm:$0xf]
  %v364 = vld [vmem:[%s2 + $0x1f8] sm:$0xf]
  %v365 = vld [vmem:[%s2 + $0x1fc] sm:$0xf]
  %v366 = vld [vmem:[%s3] sm:$0x1]
  %v368 = vperm.slane %v366, 0
  %v378 = vunpack.c.l.b16 %v230
  %v379 = vunpack.c.h.b16 %v230
  %v380 = vunpack.c.l.b16 %v231
  %v381 = vunpack.c.h.b16 %v231
  %v382 = vunpack.c.l.b16 %v232
  %v383 = vunpack.c.h.b16 %v232
  %v384 = vunpack.c.l.b16 %v233
  %v385 = vunpack.c.h.b16 %v233
  %v386 = vunpack.c.l.b16 %v234
  %v387 = vunpack.c.h.b16 %v234
  %v388 = vunpack.c.l.b16 %v235
  %v389 = vunpack.c.h.b16 %v235
  %v390 = vunpack.c.l.b16 %v236
  %v391 = vunpack.c.h.b16 %v236
  %v392 = vunpack.c.l.b16 %v237
  %v393 = vunpack.c.h.b16 %v237
  %v394 = vpack.c.b16 %v386, %v378
  %v395 = vpack.c.b16 %v387, %v379
  %v396 = vpack.c.b16 %v388, %v380
  %v397 = vpack.c.b16 %v389, %v381
  %v398 = vpack.c.b16 %v390, %v382
  %v399 = vpack.c.b16 %v391, %v383
  %v400 = vpack.c.b16 %v392, %v384
  %v401 = vpack.c.b16 %v393, %v385
  %v538 = vunpack.c.l.b16 %v238
  %v539 = vunpack.c.l.b16 %v239
  %v540 = vunpack.c.l.b16 %v240
  %v541 = vunpack.c.l.b16 %v241
  %v542 = vunpack.c.l.b16 %v242
  %v543 = vunpack.c.l.b16 %v243
  %v544 = vunpack.c.l.b16 %v244
  %v545 = vunpack.c.l.b16 %v245
  %v546 = vunpack.c.l.b16 %v246
  %v547 = vunpack.c.l.b16 %v247
  %v548 = vunpack.c.l.b16 %v248
  %v549 = vunpack.c.l.b16 %v249
  %v550 = vunpack.c.l.b16 %v250
  %v551 = vunpack.c.l.b16 %v251
  %v552 = vunpack.c.l.b16 %v252
  %v553 = vunpack.c.l.b16 %v253
  %v554 = vunpack.c.l.b16 %v254
  %v555 = vunpack.c.l.b16 %v255
  %v556 = vunpack.c.l.b16 %v256
  %v557 = vunpack.c.l.b16 %v257
  %v558 = vunpack.c.l.b16 %v258
  %v559 = vunpack.c.l.b16 %v259
  %v560 = vunpack.c.l.b16 %v260
  %v561 = vunpack.c.l.b16 %v261
  %v562 = vunpack.c.l.b16 %v262
  %v563 = vunpack.c.l.b16 %v263
  %v564 = vunpack.c.l.b16 %v264
  %v565 = vunpack.c.l.b16 %v265
  %v566 = vunpack.c.l.b16 %v266
  %v567 = vunpack.c.l.b16 %v267
  %v568 = vunpack.c.l.b16 %v268
  %v569 = vunpack.c.l.b16 %v269
  %v570 = vunpack.c.l.b16 %v270
  %v571 = vunpack.c.l.b16 %v271
  %v572 = vunpack.c.l.b16 %v272
  %v573 = vunpack.c.l.b16 %v273
  %v574 = vunpack.c.l.b16 %v274
  %v575 = vunpack.c.l.b16 %v275
  %v576 = vunpack.c.l.b16 %v276
  %v577 = vunpack.c.l.b16 %v277
  %v578 = vunpack.c.l.b16 %v278
  %v579 = vunpack.c.l.b16 %v279
  %v580 = vunpack.c.l.b16 %v280
  %v581 = vunpack.c.l.b16 %v281
  %v582 = vunpack.c.l.b16 %v282
  %v583 = vunpack.c.l.b16 %v283
  %v584 = vunpack.c.l.b16 %v284
  %v585 = vunpack.c.l.b16 %v285
  %v586 = vunpack.c.l.b16 %v286
  %v587 = vunpack.c.l.b16 %v287
  %v588 = vunpack.c.l.b16 %v288
  %v589 = vunpack.c.l.b16 %v289
  %v590 = vunpack.c.l.b16 %v290
  %v591 = vunpack.c.l.b16 %v291
  %v592 = vunpack.c.l.b16 %v292
  %v593 = vunpack.c.l.b16 %v293
  %v594 = vunpack.c.l.b16 %v294
  %v595 = vunpack.c.l.b16 %v295
  %v596 = vunpack.c.l.b16 %v296
  %v597 = vunpack.c.l.b16 %v297
  %v598 = vunpack.c.l.b16 %v298
  %v599 = vunpack.c.l.b16 %v299
  %v600 = vunpack.c.l.b16 %v300
  %v601 = vunpack.c.l.b16 %v301
  %v602 = vunpack.c.l.b16 %v302
  %v603 = vunpack.c.l.b16 %v303
  %v604 = vunpack.c.l.b16 %v304
  %v605 = vunpack.c.l.b16 %v305
  %v606 = vunpack.c.l.b16 %v306
  %v607 = vunpack.c.l.b16 %v307
  %v608 = vunpack.c.l.b16 %v308
  %v609 = vunpack.c.l.b16 %v309
  %v610 = vunpack.c.l.b16 %v310
  %v611 = vunpack.c.l.b16 %v311
  %v612 = vunpack.c.l.b16 %v312
  %v613 = vunpack.c.l.b16 %v313
  %v614 = vunpack.c.l.b16 %v314
  %v615 = vunpack.c.l.b16 %v315
  %v616 = vunpack.c.l.b16 %v316
  %v617 = vunpack.c.l.b16 %v317
  %v618 = vunpack.c.l.b16 %v318
  %v619 = vunpack.c.l.b16 %v319
  %v620 = vunpack.c.l.b16 %v320
  %v621 = vunpack.c.l.b16 %v321
  %v622 = vunpack.c.l.b16 %v322
  %v623 = vunpack.c.l.b16 %v323
  %v624 = vunpack.c.l.b16 %v324
  %v625 = vunpack.c.l.b16 %v325
  %v626 = vunpack.c.l.b16 %v326
  %v627 = vunpack.c.l.b16 %v327
  %v628 = vunpack.c.l.b16 %v328
  %v629 = vunpack.c.l.b16 %v329
  %v630 = vunpack.c.l.b16 %v330
  %v631 = vunpack.c.l.b16 %v331
  %v632 = vunpack.c.l.b16 %v332
  %v633 = vunpack.c.l.b16 %v333
  %v634 = vunpack.c.l.b16 %v334
  %v635 = vunpack.c.l.b16 %v335
  %v636 = vunpack.c.l.b16 %v336
  %v637 = vunpack.c.l.b16 %v337
  %v638 = vunpack.c.l.b16 %v338
  %v639 = vunpack.c.l.b16 %v339
  %v640 = vunpack.c.l.b16 %v340
  %v641 = vunpack.c.l.b16 %v341
  %v642 = vunpack.c.l.b16 %v342
  %v643 = vunpack.c.l.b16 %v343
  %v644 = vunpack.c.l.b16 %v344
  %v645 = vunpack.c.l.b16 %v345
  %v646 = vunpack.c.l.b16 %v346
  %v647 = vunpack.c.l.b16 %v347
  %v648 = vunpack.c.l.b16 %v348
  %v649 = vunpack.c.l.b16 %v349
  %v650 = vunpack.c.l.b16 %v350
  %v651 = vunpack.c.l.b16 %v351
  %v652 = vunpack.c.l.b16 %v352
  %v653 = vunpack.c.l.b16 %v353
  %v654 = vunpack.c.l.b16 %v354
  %v655 = vunpack.c.l.b16 %v355
  %v656 = vunpack.c.l.b16 %v356
  %v657 = vunpack.c.l.b16 %v357
  %v658 = vunpack.c.l.b16 %v358
  %v659 = vunpack.c.l.b16 %v359
  %v660 = vunpack.c.l.b16 %v360
  %v661 = vunpack.c.l.b16 %v361
  %v662 = vunpack.c.l.b16 %v362
  %v663 = vunpack.c.l.b16 %v363
  %v664 = vunpack.c.l.b16 %v364
  %v665 = vunpack.c.l.b16 %v365
  %v666 = vpack.c.b16 %v539, %v538
  %v667 = vpack.c.b16 %v541, %v540
  %v668 = vpack.c.b16 %v543, %v542
  %v669 = vpack.c.b16 %v545, %v544
  %v670 = vpack.c.b16 %v547, %v546
  %v671 = vpack.c.b16 %v549, %v548
  %v672 = vpack.c.b16 %v551, %v550
  %v673 = vpack.c.b16 %v553, %v552
  %v674 = vpack.c.b16 %v555, %v554
  %v675 = vpack.c.b16 %v557, %v556
  %v676 = vpack.c.b16 %v559, %v558
  %v677 = vpack.c.b16 %v561, %v560
  %v678 = vpack.c.b16 %v563, %v562
  %v679 = vpack.c.b16 %v565, %v564
  %v680 = vpack.c.b16 %v567, %v566
  %v681 = vpack.c.b16 %v569, %v568
  %v682 = vpack.c.b16 %v571, %v570
  %v683 = vpack.c.b16 %v573, %v572
  %v684 = vpack.c.b16 %v575, %v574
  %v685 = vpack.c.b16 %v577, %v576
  %v686 = vpack.c.b16 %v579, %v578
  %v687 = vpack.c.b16 %v581, %v580
  %v688 = vpack.c.b16 %v583, %v582
  %v689 = vpack.c.b16 %v585, %v584
  %v690 = vpack.c.b16 %v587, %v586
  %v691 = vpack.c.b16 %v589, %v588
  %v692 = vpack.c.b16 %v591, %v590
  %v693 = vpack.c.b16 %v593, %v592
  %v694 = vpack.c.b16 %v595, %v594
  %v695 = vpack.c.b16 %v597, %v596
  %v696 = vpack.c.b16 %v599, %v598
  %v697 = vpack.c.b16 %v601, %v600
  %v698 = vpack.c.b16 %v603, %v602
  %v699 = vpack.c.b16 %v605, %v604
  %v700 = vpack.c.b16 %v607, %v606
  %v701 = vpack.c.b16 %v609, %v608
  %v702 = vpack.c.b16 %v611, %v610
  %v703 = vpack.c.b16 %v613, %v612
  %v704 = vpack.c.b16 %v615, %v614
  %v705 = vpack.c.b16 %v617, %v616
  %v706 = vpack.c.b16 %v619, %v618
  %v707 = vpack.c.b16 %v621, %v620
  %v708 = vpack.c.b16 %v623, %v622
  %v709 = vpack.c.b16 %v625, %v624
  %v710 = vpack.c.b16 %v627, %v626
  %v711 = vpack.c.b16 %v629, %v628
  %v712 = vpack.c.b16 %v631, %v630
  %v713 = vpack.c.b16 %v633, %v632
  %v714 = vpack.c.b16 %v635, %v634
  %v715 = vpack.c.b16 %v637, %v636
  %v716 = vpack.c.b16 %v639, %v638
  %v717 = vpack.c.b16 %v641, %v640
  %v718 = vpack.c.b16 %v643, %v642
  %v719 = vpack.c.b16 %v645, %v644
  %v720 = vpack.c.b16 %v647, %v646
  %v721 = vpack.c.b16 %v649, %v648
  %v722 = vpack.c.b16 %v651, %v650
  %v723 = vpack.c.b16 %v653, %v652
  %v724 = vpack.c.b16 %v655, %v654
  %v725 = vpack.c.b16 %v657, %v656
  %v726 = vpack.c.b16 %v659, %v658
  %v727 = vpack.c.b16 %v661, %v660
  %v728 = vpack.c.b16 %v663, %v662
  %v729 = vpack.c.b16 %v665, %v664
  %794 = vmatpush.bf16.msra.mxu0 %v673
  %795 = vmatpush.bf16.msra.mxu0 %v672
  %796 = vmatpush.bf16.msra.mxu0 %v671
  %797 = vmatpush.bf16.msra.mxu0 %v670
  %798 = vmatpush.bf16.msra.mxu0 %v669
  %799 = vmatpush.bf16.msra.mxu0 %v668
  %800 = vmatpush.bf16.msra.mxu0 %v667
  %801 = vmatpush.bf16.msra.mxu0 %v666
  %802 = vmatmul.bf16.gmra.mxu0 %v394
  %v803 = vpop.f32.mrf.mxu0
  %v804 = vadd.f32 %v368, %v803
  %v805 = vpop.f32.mrf.mxu0
  %v806 = vadd.f32 %v368, %v805
  %807 = vdwg.mxu0
  %808 = vmatpush.bf16.msra.mxu0 %v681
  %809 = vmatpush.bf16.msra.mxu0 %v680
  %810 = vmatpush.bf16.msra.mxu0 %v679
  %811 = vmatpush.bf16.msra.mxu0 %v678
  %812 = vmatpush.bf16.msra.mxu0 %v677
  %813 = vmatpush.bf16.msra.mxu0 %v676
  %814 = vmatpush.bf16.msra.mxu0 %v675
  %815 = vmatpush.bf16.msra.mxu0 %v674
  %816 = vmatmul.bf16.gmra.mxu0 %v395
  %v817 = vpop.f32.mrf.mxu0
  %v818 = vadd.f32 %v804, %v817
  %v819 = vpop.f32.mrf.mxu0
  %v820 = vadd.f32 %v806, %v819
  %821 = vdwg.mxu0
  %822 = vmatpush.bf16.msra.mxu0 %v689
  %823 = vmatpush.bf16.msra.mxu0 %v688
  %824 = vmatpush.bf16.msra.mxu0 %v687
  %825 = vmatpush.bf16.msra.mxu0 %v686
  %826 = vmatpush.bf16.msra.mxu0 %v685
  %827 = vmatpush.bf16.msra.mxu0 %v684
  %828 = vmatpush.bf16.msra.mxu0 %v683
  %829 = vmatpush.bf16.msra.mxu0 %v682
  %830 = vmatmul.bf16.gmra.mxu0 %v396
  %v831 = vpop.f32.mrf.mxu0
  %v832 = vadd.f32 %v818, %v831
  %v833 = vpop.f32.mrf.mxu0
  %v834 = vadd.f32 %v820, %v833
  %835 = vdwg.mxu0
  %836 = vmatpush.bf16.msra.mxu0 %v697
  %837 = vmatpush.bf16.msra.mxu0 %v696
  %838 = vmatpush.bf16.msra.mxu0 %v695
  %839 = vmatpush.bf16.msra.mxu0 %v694
  %840 = vmatpush.bf16.msra.mxu0 %v693
  %841 = vmatpush.bf16.msra.mxu0 %v692
  %842 = vmatpush.bf16.msra.mxu0 %v691
  %843 = vmatpush.bf16.msra.mxu0 %v690
  %844 = vmatmul.bf16.gmra.mxu0 %v397
  %v845 = vpop.f32.mrf.mxu0
  %v846 = vadd.f32 %v832, %v845
  %v847 = vpop.f32.mrf.mxu0
  %v848 = vadd.f32 %v834, %v847
  %849 = vdwg.mxu0
  %850 = vmatpush.bf16.msra.mxu0 %v705
  %851 = vmatpush.bf16.msra.mxu0 %v704
  %852 = vmatpush.bf16.msra.mxu0 %v703
  %853 = vmatpush.bf16.msra.mxu0 %v702
  %854 = vmatpush.bf16.msra.mxu0 %v701
  %855 = vmatpush.bf16.msra.mxu0 %v700
  %856 = vmatpush.bf16.msra.mxu0 %v699
  %857 = vmatpush.bf16.msra.mxu0 %v698
  %858 = vmatmul.bf16.gmra.mxu0 %v398
  %v859 = vpop.f32.mrf.mxu0
  %v860 = vadd.f32 %v846, %v859
  %v861 = vpop.f32.mrf.mxu0
  %v862 = vadd.f32 %v848, %v861
  %863 = vdwg.mxu0
  %864 = vmatpush.bf16.msra.mxu0 %v713
  %865 = vmatpush.bf16.msra.mxu0 %v712
  %866 = vmatpush.bf16.msra.mxu0 %v711
  %867 = vmatpush.bf16.msra.mxu0 %v710
  %868 = vmatpush.bf16.msra.mxu0 %v709
  %869 = vmatpush.bf16.msra.mxu0 %v708
  %870 = vmatpush.bf16.msra.mxu0 %v707
  %871 = vmatpush.bf16.msra.mxu0 %v706
  %872 = vmatmul.bf16.gmra.mxu0 %v399
  %v873 = vpop.f32.mrf.mxu0
  %v874 = vadd.f32 %v860, %v873
  %v875 = vpop.f32.mrf.mxu0
  %v876 = vadd.f32 %v862, %v875
  %877 = vdwg.mxu0
  %878 = vmatpush.bf16.msra.mxu0 %v721
  %879 = vmatpush.bf16.msra.mxu0 %v720
  %880 = vmatpush.bf16.msra.mxu0 %v719
  %881 = vmatpush.bf16.msra.mxu0 %v718
  %882 = vmatpush.bf16.msra.mxu0 %v717
  %883 = vmatpush.bf16.msra.mxu0 %v716
  %884 = vmatpush.bf16.msra.mxu0 %v715
  %885 = vmatpush.bf16.msra.mxu0 %v714
  %886 = vmatmul.bf16.gmra.mxu0 %v400
  %v887 = vpop.f32.mrf.mxu0
  %v888 = vadd.f32 %v874, %v887
  %v889 = vpop.f32.mrf.mxu0
  %v890 = vadd.f32 %v876, %v889
  %891 = vdwg.mxu0
  %892 = vmatpush.bf16.msra.mxu0 %v729
  %893 = vmatpush.bf16.msra.mxu0 %v728
  %894 = vmatpush.bf16.msra.mxu0 %v727
  %895 = vmatpush.bf16.msra.mxu0 %v726
  %896 = vmatpush.bf16.msra.mxu0 %v725
  %897 = vmatpush.bf16.msra.mxu0 %v724
  %898 = vmatpush.bf16.msra.mxu0 %v723
  %899 = vmatpush.bf16.msra.mxu0 %v722
  %900 = vmatmul.bf16.gmra.mxu0 %v401
  %v901 = vpop.f32.mrf.mxu0
  %v902 = vadd.f32 %v888, %v901
  %v903 = vpop.f32.mrf.mxu0
  %v904 = vadd.f32 %v890, %v903
  %905 = vdwg.mxu0
  %906 = vmax.xlane.f32.xlu0 %v902
  %v907 = vpop.xlane.xlu0 %906
  %908 = vmax.xlane.f32.xlu0 %v904
  %v909 = vpop.xlane.xlu0 %908
  %v910 = vsub.f32 %v902, %v907
  %v911 = vsub.f32 %v904, %v909
  %v912 = vmul.f32 %v910, 1.442695
  %v913 = vpow.pop %v912
  %v914 = vmul.f32 %v911, 1.442695
  %v915 = vpow.pop %v914
  %916 = vadd.xlane.f32.xlu0 %v913
  %v917 = vpop.xlane.xlu0 %916
  %918 = vadd.xlane.f32.xlu0 %v915
  %v919 = vpop.xlane.xlu0 %918
  %v920 = vmul.f32 %v913, %v910
  %v921 = vmul.f32 %v915, %v911
  %922 = vadd.xlane.f32.xlu0 %v920
  %v923 = vpop.xlane.xlu0 %922
  %924 = vadd.xlane.f32.xlu0 %v921
  %v925 = vpop.xlane.xlu0 %924
  %v926 = vlog2.pop %v917
  %v927 = vmul.f32 %v926, 0.6931472
  %v928 = vlog2.pop %v919
  %v929 = vmul.f32 %v928, 0.6931472
  %v930 = vrcp.pop %v917
  %v931 = vmul.f32 %v917, %v930
  %v932 = vsub.f32 1.0, %v931
  %v933 = vmul.f32 %v930, %v932
  %v934 = vadd.f32 %v930, %v933
  %vm935 = vweird.f32 %v917
  %vm936 = vweird.f32 %v930
  %vm937 = vmor %vm935, %vm936
  %v938 = vsel %vm937, %v930, %v934
  %v939 = vand.u32 2147483647, %v917
  %vm940 = vcmp.eq.f32.partialorder %v939, 8.507059e+37
  %v941 = vand.u32 %v917, 2147483648
  %v942 = vor.u32 1.1754944e-38, %v941
  %v943 = vsel %vm940, %v942, %v938
  %v944 = vmul.f32 %v923, %v943
  %v945 = vrcp.pop %v919
  %v946 = vmul.f32 %v919, %v945
  %v947 = vsub.f32 1.0, %v946
  %v948 = vmul.f32 %v945, %v947
  %v949 = vadd.f32 %v945, %v948
  %vm950 = vweird.f32 %v919
  %vm951 = vweird.f32 %v945
  %vm952 = vmor %vm950, %vm951
  %v953 = vsel %vm952, %v945, %v949
  %v954 = vand.u32 2147483647, %v919
  %vm955 = vcmp.eq.f32.partialorder %v954, 8.507059e+37
  %v956 = vand.u32 %v919, 2147483648
  %v957 = vor.u32 1.1754944e-38, %v956
  %v958 = vsel %vm955, %v957, %v953
  %v959 = vmul.f32 %v925, %v958
  %v960 = vsub.f32 %v927, %v944
  %v961 = vsub.f32 %v929, %v959
  %v962 = vld [vmem:[%s4] sm:$0xff]
  %v963 = vld [vmem:[%s4 + $0x8] sm:$0xff]
  %v964 = vmul.f32 %v960, %v962
  %v965 = vmul.f32 %v961, %v963
  %v966 = vadd.f32 %v964, %v965
  %v967 = vrot.slane %v966, 4
  %v968 = vadd.f32 %v966, %v967
  %v969 = vrot.slane %v968, 2
  %v970 = vadd.f32 %v968, %v969
  %v971 = vrot.slane %v970, 1
  %v972 = vadd.f32 %v970, %v971
  %973 = vst [vmem:[%s5] sm:$0x1] %v972
  // Predicated region
  $region22: #{strip_detection.1} parent=0 // pred_check
    _
  $region23: #{strip_detection.1} parent=0 // pred_check_branch
    %975 = sbr.rel (0) target = $region25
  $region24: #{strip_detection.1} parent=0 // pred_region
    _
  $region25: #{strip_detection.1} parent=0 // pred_fallthru
    _
  // Predicated region
  $region26: #{strip_detection.1} parent=0 // pred_check
    _
  $region27: #{strip_detection.1} parent=0 // pred_check_branch
    %977 = sbr.rel (0) target = $region29
  $region28: #{strip_detection.1} parent=0 // pred_region
    _
  $region29: #{strip_detection.1} parent=0 // pred_fallthru
    _

</llo_original>
